<compile_context>
chip_gen: v6e
topology: v6e:2x2x1
jax: 0.10.0
libtpu: 0.0.40
codegen_flags: <defaults>
</compile_context>

<pallas_src>
import functools

import jax
import jax.numpy as jnp
from jax.experimental import pallas as pl
from jax.experimental.pallas import tpu as pltpu


VMEM_LIMIT_BYTES = 48 * 1024 * 1024    # < 64 MiB physical on v7x; fine on v5e/v6e.
_TILE_BUDGET_BYTES = 36 * 1024 * 1024  # headroom under the limit for pipelining.


def _round_up(x, m):
    return (x + m - 1) // m * m


# ----------------------------------------------------------------------------
# Kernel
# ----------------------------------------------------------------------------
def _net_kernel(num_hidden_layers, x_ref, w_h_ref, b_h_ref, *rest):
    if num_hidden_layers > 0:
        w_list_ref, b_list_ref, w_p_ref, b_p_ref, out_ref = rest
    else:
        w_p_ref, b_p_ref, out_ref = rest

    # BatchNorm (eval) is pre-folded into (w_h, b_h); dropout is identity in eval.
    # x is already bf16 (cast in the wrapper) -> straight onto the MXU.
    x = x_ref[...]                                               # (TB, F_pad) bf16

    # First linear + ReLU, f32 accumulation on the MXU.
    h = jnp.dot(x, w_h_ref[...], preferred_element_type=jnp.float32)
    h = jnp.maximum(h + b_h_ref[...], 0.0)                       # (TB, H_pad) f32

    # Residual hidden stack (static, small L -> unrolled).
    for i in range(num_hidden_layers):
        z = jnp.dot(h.astype(jnp.bfloat16), w_list_ref[i],
                    preferred_element_type=jnp.float32)
        h = h + jnp.maximum(z + b_list_ref[i], 0.0)

    # Predict. Output last dim padded to 128 -> lane-dense (unmasked) stores.
    y = jnp.dot(h.astype(jnp.bfloat16), w_p_ref[...],
                preferred_element_type=jnp.float32) + b_p_ref[...]
    out_ref[...] = y.astype(out_ref.dtype)


# ----------------------------------------------------------------------------
# One-time parameter preparation (BN fold + padding + bf16 cast)
# ----------------------------------------------------------------------------
def prepare_params(params, num_hidden_layers):
    """Fold eval-mode BatchNorm into the first linear, pad hidden/output dims to
    a multiple of 128 (feature dim only to 16 for bf16 packing), cast matmul
    weights to bf16. Call once, offline."""
    eps = 1e-5  # PyTorch BatchNorm1d default
    w_h, b_h = params["w_h"], params["b_h"]                # (F, H), (1, H)
    f, h = w_h.shape
    o = params["w_p"].shape[1]

    scale = params["bn_gamma"] * jax.lax.rsqrt(params["bn_var"] + eps)   # (1, F)
    shift = params["bn_beta"] - params["bn_mean"] * scale                # (1, F)
    w_h_f = w_h * scale.reshape(f, 1)        # diag(scale) @ W_h
    b_h_f = b_h + shift @ w_h                # (1, H)

    f_pad = _round_up(f, 16)                 # bf16 sublane packing only; no 8x inflation
    h_pad = _round_up(h, 128)
    o_pad = _round_up(o, 128)

    def pad2(a, rows, cols):
        return jnp.pad(a, ((0, rows - a.shape[0]), (0, cols - a.shape[1])))

    prepared = {
        "w_h": pad2(w_h_f, f_pad, h_pad).astype(jnp.bfloat16),
        "b_h": pad2(b_h_f, 1, h_pad),
        "w_p": pad2(params["w_p"], h_pad, o_pad).astype(jnp.bfloat16),
        "b_p": pad2(params["b_p"], 1, o_pad),
        "dims": (f, h, o, f_pad, h_pad, o_pad, num_hidden_layers),
    }
    if num_hidden_layers > 0:
        prepared["w_list"] = jnp.pad(
            params["w_list"], ((0, 0), (0, h_pad - h), (0, h_pad - h))
        ).astype(jnp.bfloat16)
        prepared["b_list"] = jnp.pad(
            params["b_list"], ((0, 0), (0, 0), (0, h_pad - h)))
    return prepared


def _pick_batch_tile(batch, f_pad, h_pad, o_pad, num_layers,
                     budget_bytes=_TILE_BUDGET_BYTES):
    # Resident (constant index_map) params: bf16 weights + f32 biases.
    # The default pipeline double-buffers them -> 2x multiplier.
    resident = 2 * (
        2 * (f_pad * h_pad + num_layers * h_pad * h_pad + h_pad * o_pad)
        + 4 * ((1 + num_layers) * h_pad + o_pad))
    if resident > budget_bytes:
        # TODO(synk): layer-as-grid fallback (one (H,H) weight block resident at a
        # time across an "arbitrary" layer axis) for very large H/L.
        raise NotImplementedError(
            "Resident weights exceed the VMEM tile budget; layer-tiled variant "
            "not implemented for these sizes.")

    b_ceil = _round_up(max(batch, 1), 16)
    if batch >= 32:
        # Keep >= 2 grid steps so the "parallel" batch axis actually shards
        # across both TensorCores on v7x.
        b_ceil = min(b_ceil, _round_up(-(-batch // 2), 16))

    tb = 16
    for cand in (2048, 1024, 512, 256, 128, 64, 32, 16):
        if cand > b_ceil:
            continue
        # Double-buffered bf16 x tile + f32 out tile + f32 activation working set.
        per_tile = cand * (2 * 2 * f_pad + 2 * 4 * o_pad + 4 * 4 * h_pad)
        if resident + per_tile <= budget_bytes:
            tb = cand
            break
    return tb


# ----------------------------------------------------------------------------
# Forward (jitted: pad -> pallas_call -> slice fused under one jit)
# ----------------------------------------------------------------------------
@functools.partial(jax.jit, static_argnames=("dims",))
def _net_forward_impl(x, w_h, b_h, w_list, b_list, w_p, b_p, *, dims):
    f, _h, o, f_pad, h_pad, o_pad, num_layers = dims
    batch = x.shape[0]

    tb = _pick_batch_tile(batch, f_pad, h_pad, o_pad, num_layers)
    b_pad = max(_round_up(batch, tb), tb)

    # bf16 input stream; feature dim padded only to a multiple of 16.
    x_p = jnp.pad(x.astype(jnp.bfloat16),
                  ((0, b_pad - batch), (0, f_pad - f)))

    in_specs = [
        pl.BlockSpec((tb, f_pad), lambda i: (i, 0)),          # x: batch-tiled, bf16
        pl.BlockSpec((f_pad, h_pad), lambda i: (0, 0)),       # w_h: resident
        pl.BlockSpec((1, h_pad), lambda i: (0, 0)),           # b_h: resident
    ]
    inputs = [x_p, w_h, b_h]
    if num_layers > 0:
        in_specs += [
            pl.BlockSpec((num_layers, h_pad, h_pad), lambda i: (0, 0, 0)),
            pl.BlockSpec((num_layers, 1, h_pad), lambda i: (0, 0, 0)),
        ]
        inputs += [w_list, b_list]
    in_specs += [
        pl.BlockSpec((h_pad, o_pad), lambda i: (0, 0)),       # w_p: resident
        pl.BlockSpec((1, o_pad), lambda i: (0, 0)),           # b_p: resident
    ]
    inputs += [w_p, b_p]

    out = pl.pallas_call(
        functools.partial(_net_kernel, num_layers),
        out_shape=jax.ShapeDtypeStruct((b_pad, o_pad), jnp.float32),
        grid_spec=pltpu.PrefetchScalarGridSpec(
            num_scalar_prefetch=0,
            grid=(b_pad // tb,),
            in_specs=in_specs,
            out_specs=pl.BlockSpec((tb, o_pad), lambda i: (i, 0)),
        ),
        compiler_params=pltpu.CompilerParams(
            dimension_semantics=("parallel",),     # shards across v7x's 2 TCs
            vmem_limit_bytes=VMEM_LIMIT_BYTES,
        ),
    )(*inputs)

    # Slice fused under the same jit -> tiny (batch, o) copy, not a full round-trip.
    return out[:batch, :o]


def net_forward(x, prepared):
    """x: (B, n_feature) float32. prepared: output of prepare_params()."""
    num_layers = prepared["dims"][-1]
    return _net_forward_impl(
        x, prepared["w_h"], prepared["b_h"],
        prepared.get("w_list") if num_layers > 0 else None,
        prepared.get("b_list") if num_layers > 0 else None,
        prepared["w_p"], prepared["b_p"],
        dims=prepared["dims"])


# ----------------------------------------------------------------------------
# Parameter init (same shapes as the PyTorch module) and references
# ----------------------------------------------------------------------------
def init_params(key, n_feature, n_hidden, n_output, num_hidden_layers):
    ks = jax.random.split(key, 8)

    def lin(k, fan_in, fan_out):
        # nn.Linear-style uniform init; weight stored as (in, out) for x @ W.
        bound = 1.0 / jnp.sqrt(jnp.float32(fan_in))
        kw, kb = jax.random.split(k)
        w = jax.random.uniform(kw, (fan_in, fan_out), jnp.float32, -bound, bound)
        b = jax.random.uniform(kb, (1, fan_out), jnp.float32, -bound, bound)
        return w, b

    w_h, b_h = lin(ks[0], n_feature, n_hidden)
    w_p, b_p = lin(ks[1], n_hidden, n_output)

    w_list, b_list = [], []
    layer_keys = jax.random.split(ks[2], max(num_hidden_layers, 1))
    for i in range(num_hidden_layers):
        w_i, b_i = lin(layer_keys[i], n_hidden, n_hidden)
        w_list.append(w_i)
        b_list.append(b_i)
    w_list = (jnp.stack(w_list) if num_hidden_layers > 0
              else jnp.zeros((0, n_hidden, n_hidden), jnp.float32))
    b_list = (jnp.stack(b_list) if num_hidden_layers > 0
              else jnp.zeros((0, 1, n_hidden), jnp.float32))

    bn_gamma = 1.0 + 0.1 * jax.random.normal(ks[3], (1, n_feature), jnp.float32)
    bn_beta = 0.1 * jax.random.normal(ks[4], (1, n_feature), jnp.float32)
    bn_mean = 0.05 * jax.random.normal(ks[5], (1, n_feature), jnp.float32)
    bn_var = 1.0 + 0.1 * jax.random.uniform(ks[6], (1, n_feature), jnp.float32)

    return {
        "bn_gamma": bn_gamma, "bn_beta": bn_beta,
        "bn_mean": bn_mean, "bn_var": bn_var,
        "w_h": w_h, "b_h": b_h,
        "w_list": w_list, "b_list": b_list,
        "w_p": w_p, "b_p": b_p,
    }


def net_reference(x, params, num_hidden_layers):
    """Pure-JAX f32 reference of the original forward pass (eval mode)."""
    eps = 1e-5
    inv_std = jax.lax.rsqrt(params["bn_var"] + eps)
    h = (x - params["bn_mean"]) * (params["bn_gamma"] * inv_std) + params["bn_beta"]
    h = jnp.maximum(h @ params["w_h"] + params["b_h"], 0.0)
    for i in range(num_hidden_layers):
        h = h + jnp.maximum(h @ params["w_list"][i] + params["b_list"][i], 0.0)
    return h @ params["w_p"] + params["b_p"]


def prepared_reference(x, prepared):
    """Mirror of the kernel math (same bf16 weights/inputs, f32 accumulation)."""
    f, _h, o, f_pad, h_pad, o_pad, num_layers = prepared["dims"]
    xb = jnp.pad(x.astype(jnp.bfloat16), ((0, 0), (0, f_pad - f)))
    h = jnp.dot(xb, prepared["w_h"], preferred_element_type=jnp.float32)
    h = jnp.maximum(h + prepared["b_h"], 0.0)
    for i in range(num_layers):
        z = jnp.dot(h.astype(jnp.bfloat16), prepared["w_list"][i],
                    preferred_element_type=jnp.float32)
        h = h + jnp.maximum(z + prepared["b_list"][i], 0.0)
    y = jnp.dot(h.astype(jnp.bfloat16), prepared["w_p"],
                preferred_element_type=jnp.float32) + prepared["b_p"]
    return y[:, :o]


if __name__ == "__main__":
    # Small shapes consistent with the module's forward pass.
    batch = 8
    n_feature = 16
    n_hidden = 32
    n_output = 4
    num_hidden_layers = 2
    # dropout_prob is irrelevant at inference (dropout == identity).

    key = jax.random.PRNGKey(0)
    k_x, k_p = jax.random.split(key)
    x = jax.random.normal(k_x, (batch, n_feature), jnp.float32)
    params = init_params(k_p, n_feature, n_hidden, n_output, num_hidden_layers)

    prepared = prepare_params(params, num_hidden_layers)   # one-time offline prep

    out = net_forward(x, prepared)
    out = jax.block_until_ready(out)
    assert out.shape == (batch, n_output)

    # Tight check vs. an exact mirror of the kernel math (bf16 operands, f32 acc).
    ref_mirror = prepared_reference(x, prepared)
    assert jnp.allclose(out, ref_mirror, atol=2e-3, rtol=2e-3)

    # Loose check vs. the original full-f32 module semantics (bf16 matmul operands).
    ref_f32 = net_reference(x, params, num_hidden_layers)
    assert jnp.allclose(out, ref_f32, atol=5e-2, rtol=5e-2)

    print("KERNEL_OK")
</pallas_src>

<mosaic_0001>
module attributes {stable_mosaic.version = 11 : i64} {
  func.func @_net_kernel(%arg0: i32, %arg1: memref<16x16xbf16, #tpu.memory_space<vmem>>, %arg2: memref<16x128xbf16, #tpu.memory_space<vmem>>, %arg3: memref<1x128xf32, #tpu.memory_space<vmem>>, %arg4: memref<2x128x128xbf16, #tpu.memory_space<vmem>>, %arg5: memref<2x1x128xf32, #tpu.memory_space<vmem>>, %arg6: memref<128x128xbf16, #tpu.memory_space<vmem>>, %arg7: memref<1x128xf32, #tpu.memory_space<vmem>>, %arg8: memref<16x128xf32, #tpu.memory_space<vmem>>) attributes {dimension_semantics = [#tpu.dimension_semantics<parallel>], iteration_bounds = array<i64: 1>, scalar_prefetch = 0 : i64, scratch_operands = 0 : i64, tpu.core_type = #tpu.core_type<tc>, window_params = [{transform_indices = @transform_0, window_bounds = array<i64: 16, 16>}, {pipeline_mode = #tpu.pipeline_mode<synchronous>, transform_indices = @transform_1, window_bounds = array<i64: 16, 128>}, {pipeline_mode = #tpu.pipeline_mode<synchronous>, transform_indices = @transform_2, window_bounds = array<i64: 1, 128>}, {pipeline_mode = #tpu.pipeline_mode<synchronous>, transform_indices = @transform_3, window_bounds = array<i64: 2, 128, 128>}, {pipeline_mode = #tpu.pipeline_mode<synchronous>, transform_indices = @transform_4, window_bounds = array<i64: 2, 1, 128>}, {pipeline_mode = #tpu.pipeline_mode<synchronous>, transform_indices = @transform_5, window_bounds = array<i64: 128, 128>}, {pipeline_mode = #tpu.pipeline_mode<synchronous>, transform_indices = @transform_6, window_bounds = array<i64: 1, 128>}, {transform_indices = @transform_7, window_bounds = array<i64: 16, 128>}]} {
    %c0 = arith.constant 0 : index
    %c0_0 = arith.constant 0 : index
    %0 = vector.load %arg1[%c0, %c0_0] : memref<16x16xbf16, #tpu.memory_space<vmem>>, vector<16x16xbf16>
    %c0_1 = arith.constant 0 : index
    %c0_2 = arith.constant 0 : index
    %1 = vector.load %arg2[%c0_1, %c0_2] : memref<16x128xbf16, #tpu.memory_space<vmem>>, vector<16x128xbf16>
    %cst = arith.constant dense<0.000000e+00> : vector<16x128xf32>
    %2 = tpu.matmul %0, %1, %cst {dimension_numbers = #tpu.dot_dimension_numbers<[1], [0], [0], [1], [0, 0, 1, 1], [], []>} : vector<16x16xbf16>, vector<16x128xbf16>, vector<16x128xf32> -> vector<16x128xf32>
    %c0_3 = arith.constant 0 : index
    %c0_4 = arith.constant 0 : index
    %3 = vector.load %arg3[%c0_3, %c0_4] : memref<1x128xf32, #tpu.memory_space<vmem>>, vector<1x128xf32>
    %4 = vector.broadcast %3 : vector<1x128xf32> to vector<16x128xf32>
    %5 = arith.addf %2, %4 : vector<16x128xf32>
    %cst_5 = arith.constant 0.000000e+00 : f32
    %6 = vector.broadcast %cst_5 : f32 to vector<16x128xf32>
    %7 = arith.maximumf %5, %6 : vector<16x128xf32>
    %8 = arith.truncf %7 : vector<16x128xf32> to vector<16x128xbf16>
    %c0_6 = arith.constant 0 : index
    %c0_7 = arith.constant 0 : index
    %c0_8 = arith.constant 0 : index
    %9 = vector.load %arg4[%c0_6, %c0_7, %c0_8] : memref<2x128x128xbf16, #tpu.memory_space<vmem>>, vector<1x128x128xbf16>
    %10 = vector.shape_cast %9 : vector<1x128x128xbf16> to vector<128x128xbf16>
    %cst_9 = arith.constant dense<0.000000e+00> : vector<16x128xf32>
    %11 = tpu.matmul %8, %10, %cst_9 {dimension_numbers = #tpu.dot_dimension_numbers<[1], [0], [0], [1], [0, 0, 1, 1], [], []>} : vector<16x128xbf16>, vector<128x128xbf16>, vector<16x128xf32> -> vector<16x128xf32>
    %c0_10 = arith.constant 0 : index
    %c0_11 = arith.constant 0 : index
    %c0_12 = arith.constant 0 : index
    %12 = vector.load %arg5[%c0_10, %c0_11, %c0_12] : memref<2x1x128xf32, #tpu.memory_space<vmem>>, vector<1x1x128xf32>
    %13 = vector.shape_cast %12 : vector<1x1x128xf32> to vector<1x128xf32>
    %14 = vector.broadcast %13 : vector<1x128xf32> to vector<16x128xf32>
    %15 = arith.addf %11, %14 : vector<16x128xf32>
    %cst_13 = arith.constant 0.000000e+00 : f32
    %16 = vector.broadcast %cst_13 : f32 to vector<16x128xf32>
    %17 = arith.maximumf %15, %16 : vector<16x128xf32>
    %18 = arith.addf %7, %17 : vector<16x128xf32>
    %19 = arith.truncf %18 : vector<16x128xf32> to vector<16x128xbf16>
    %c1 = arith.constant 1 : index
    %c0_14 = arith.constant 0 : index
    %c0_15 = arith.constant 0 : index
    %20 = vector.load %arg4[%c1, %c0_14, %c0_15] : memref<2x128x128xbf16, #tpu.memory_space<vmem>>, vector<1x128x128xbf16>
    %21 = vector.shape_cast %20 : vector<1x128x128xbf16> to vector<128x128xbf16>
    %cst_16 = arith.constant dense<0.000000e+00> : vector<16x128xf32>
    %22 = tpu.matmul %19, %21, %cst_16 {dimension_numbers = #tpu.dot_dimension_numbers<[1], [0], [0], [1], [0, 0, 1, 1], [], []>} : vector<16x128xbf16>, vector<128x128xbf16>, vector<16x128xf32> -> vector<16x128xf32>
    %c1_17 = arith.constant 1 : index
    %c0_18 = arith.constant 0 : index
    %c0_19 = arith.constant 0 : index
    %23 = vector.load %arg5[%c1_17, %c0_18, %c0_19] : memref<2x1x128xf32, #tpu.memory_space<vmem>>, vector<1x1x128xf32>
    %24 = vector.shape_cast %23 : vector<1x1x128xf32> to vector<1x128xf32>
    %25 = vector.broadcast %24 : vector<1x128xf32> to vector<16x128xf32>
    %26 = arith.addf %22, %25 : vector<16x128xf32>
    %cst_20 = arith.constant 0.000000e+00 : f32
    %27 = vector.broadcast %cst_20 : f32 to vector<16x128xf32>
    %28 = arith.maximumf %26, %27 : vector<16x128xf32>
    %29 = arith.addf %18, %28 : vector<16x128xf32>
    %30 = arith.truncf %29 : vector<16x128xf32> to vector<16x128xbf16>
    %c0_21 = arith.constant 0 : index
    %c0_22 = arith.constant 0 : index
    %31 = vector.load %arg6[%c0_21, %c0_22] : memref<128x128xbf16, #tpu.memory_space<vmem>>, vector<128x128xbf16>
    %cst_23 = arith.constant dense<0.000000e+00> : vector<16x128xf32>
    %32 = tpu.matmul %30, %31, %cst_23 {dimension_numbers = #tpu.dot_dimension_numbers<[1], [0], [0], [1], [0, 0, 1, 1], [], []>} : vector<16x128xbf16>, vector<128x128xbf16>, vector<16x128xf32> -> vector<16x128xf32>
    %c0_24 = arith.constant 0 : index
    %c0_25 = arith.constant 0 : index
    %33 = vector.load %arg7[%c0_24, %c0_25] : memref<1x128xf32, #tpu.memory_space<vmem>>, vector<1x128xf32>
    %34 = vector.broadcast %33 : vector<1x128xf32> to vector<16x128xf32>
    %35 = arith.addf %32, %34 : vector<16x128xf32>
    %c0_26 = arith.constant 0 : index
    %c0_27 = arith.constant 0 : index
    %36 = vector.load %arg8[%c0_26, %c0_27] : memref<16x128xf32, #tpu.memory_space<vmem>>, vector<16x128xf32>
    tpu.vector_store %arg8[%c0_26, %c0_27], %35 {strides = array<i32>} : memref<16x128xf32, #tpu.memory_space<vmem>>, vector<16x128xf32>,
    return
  }
  func.func @transform_0(%arg0: i32) -> (i32, i32) {
    %c0_i32 = arith.constant 0 : i32
    %c0_i32_0 = arith.constant 0 : i32
    return %arg0, %c0_i32 : i32, i32
  }
  func.func @transform_1(%arg0: i32) -> (i32, i32) {
    %c0_i32 = arith.constant 0 : i32
    %c0_i32_0 = arith.constant 0 : i32
    %c0_i32_1 = arith.constant 0 : i32
    return %c0_i32, %c0_i32_0 : i32, i32
  }
  func.func @transform_2(%arg0: i32) -> (i32, i32) {
    %c0_i32 = arith.constant 0 : i32
    %c0_i32_0 = arith.constant 0 : i32
    %c0_i32_1 = arith.constant 0 : i32
    return %c0_i32, %c0_i32_0 : i32, i32
  }
  func.func @transform_3(%arg0: i32) -> (i32, i32, i32) {
    %c0_i32 = arith.constant 0 : i32
    %c0_i32_0 = arith.constant 0 : i32
    %c0_i32_1 = arith.constant 0 : i32
    %c0_i32_2 = arith.constant 0 : i32
    return %c0_i32, %c0_i32_0, %c0_i32_1 : i32, i32, i32
  }
  func.func @transform_4(%arg0: i32) -> (i32, i32, i32) {
    %c0_i32 = arith.constant 0 : i32
    %c0_i32_0 = arith.constant 0 : i32
    %c0_i32_1 = arith.constant 0 : i32
    %c0_i32_2 = arith.constant 0 : i32
    return %c0_i32, %c0_i32_0, %c0_i32_1 : i32, i32, i32
  }
  func.func @transform_5(%arg0: i32) -> (i32, i32) {
    %c0_i32 = arith.constant 0 : i32
    %c0_i32_0 = arith.constant 0 : i32
    %c0_i32_1 = arith.constant 0 : i32
    return %c0_i32, %c0_i32_0 : i32, i32
  }
  func.func @transform_6(%arg0: i32) -> (i32, i32) {
    %c0_i32 = arith.constant 0 : i32
    %c0_i32_0 = arith.constant 0 : i32
    %c0_i32_1 = arith.constant 0 : i32
    return %c0_i32, %c0_i32_0 : i32, i32
  }
  func.func @transform_7(%arg0: i32) -> (i32, i32) {
    %c0_i32 = arith.constant 0 : i32
    %c0_i32_0 = arith.constant 0 : i32
    return %arg0, %c0_i32 : i32, i32
  }
}

</mosaic_0001>

<llo_original>
// kernel: _net_forward_impl.1
$region0: #{_net_forward_impl.1}
  #allocation0 [shape = 'u32[]', space=smem, size = 0x4, offset = 0x4, fixed_abs, tag = 'smem constant byte address 0x4 - core index']
  #allocation1 [shape = 'u32[144,128]{1,0:T(1,128)}', space=vmem, size = 0x12000, scoped, tag = 'internal scratch']
  %s0 = inlined_call_operand.vmem [shape: bf16[16,16], index: 0, kind: input, shape index: {}]
  %s1 = inlined_call_operand.vmem [shape: bf16[16,128], index: 1, kind: input, shape index: {}]
  %s2 = inlined_call_operand.vmem [shape: f32[1,128], index: 2, kind: input, shape index: {}]
  %s3 = inlined_call_operand.hbm [shape: bf16[2,128,128], index: 3, kind: input, shape index: {}]
  %s4 = inlined_call_operand.vmem [shape: f32[2,1,128], index: 4, kind: input, shape index: {}]
  %s5 = inlined_call_operand.hbm [shape: bf16[128,128], index: 5, kind: input, shape index: {}]
  %s6 = inlined_call_operand.vmem [shape: f32[1,128], index: 6, kind: input, shape index: {}]
  %s7 = inlined_call_operand.vmem [shape: f32[16,128], index: 7, kind: output, shape index: {}]
  %s8 = sld [smem:[#allocation0]]
  $region46: #{_net_forward_impl.1} parent=0
    _
  %s10 = ssub.s32 1, %s8
  %s11 = scalar_select 0, %s10, %s8
  $region1: #{_net_forward_impl.1} parent=0
    #allocation2 [shape = 'u8[65536]{0}', space=vmem, size = 0x10000, scoped, tag = 'input window, operand 3, single buffered']
    #allocation3 [shape = 's32[1]{0}', space=sflag, size = 0x4, scoped, tag = 'scoped memory for _net_forward_impl.1']
    #allocation4 [shape = 'u8[32768]{0}', space=vmem, size = 0x8000, scoped, tag = 'input window, operand 5, single buffered']
    #allocation5 [shape = 's32[1]{0}', space=sflag, size = 0x4, scoped, tag = 'scoped memory for _net_forward_impl.1']
    %12 = vsyncpa [#allocation3], 0
    %13 = vsyncpa [#allocation5], 0
    // Predicated region
    $region2: #{_net_forward_impl.1} parent=1 // pred_check
      _
    $region3: #{_net_forward_impl.1} parent=1 // pred_check_branch
      %15 = sbr.rel (0) target = $region5
    $region4: #{_net_forward_impl.1} parent=1 // pred_region
      _
    $region5: #{_net_forward_impl.1} parent=1 // pred_fallthru
      _
    // Predicated region
    $region6: #{_net_forward_impl.1} parent=1 // pred_check
      _
    $region7: #{_net_forward_impl.1} parent=1 // pred_check_branch
      %17 = sbr.rel (0) target = $region9
    $region8: #{_net_forward_impl.1} parent=1 // pred_region
      _
    $region9: #{_net_forward_impl.1} parent=1 // pred_fallthru
      _
    // Predicated region
    $region10: #{_net_forward_impl.1} parent=1 // pred_check
      _
    $region11: #{_net_forward_impl.1} parent=1 // pred_check_branch
      %19 = sbr.rel (0) target = $region13
    $region12: #{_net_forward_impl.1} parent=1 // pred_region
      _
    $region13: #{_net_forward_impl.1} parent=1 // pred_fallthru
      _
    // Predicated region
    $region14: #{_net_forward_impl.1} parent=1 // pred_check
      _
    $region15: #{_net_forward_impl.1} parent=1 // pred_check_branch
      %21 = sbr.rel (0) target = $region17
    $region16: #{_net_forward_impl.1} parent=1 // pred_region
      %s23 = ssub.s32 2048, 2048
      %24 = vsyncadd [#allocation3], %s23
      %s25 = sshll.u32 [#allocation2], 4
      %s26 = int_to_ptr.vmem [resolvable:$true] %s25
      %31 = dma.hbm_to_vmem [thread:$0]  %s3, 2048, %s26, [#allocation3], 64, 64, 4
    $region17: #{_net_forward_impl.1} parent=1 // pred_fallthru
      _
    // Predicated region
    $region18: #{_net_forward_impl.1} parent=1 // pred_check
      _
    $region19: #{_net_forward_impl.1} parent=1 // pred_check_branch
      %33 = sbr.rel (0) target = $region21
    $region20: #{_net_forward_impl.1} parent=1 // pred_region
      _
    $region21: #{_net_forward_impl.1} parent=1 // pred_fallthru
      _
    // Predicated region
    $region22: #{_net_forward_impl.1} parent=1 // pred_check
      _
    $region23: #{_net_forward_impl.1} parent=1 // pred_check_branch
      %35 = sbr.rel (0) target = $region25
    $region24: #{_net_forward_impl.1} parent=1 // pred_region
      %s37 = ssub.s32 1024, 1024
      %38 = vsyncadd [#allocation5], %s37
      %s39 = sshll.u32 [#allocation4], 4
      %s40 = int_to_ptr.vmem [resolvable:$true] %s39
      %45 = dma.hbm_to_vmem [thread:$0]  %s5, 1024, %s40, [#allocation5], 64, 64, 4
    $region25: #{_net_forward_impl.1} parent=1 // pred_fallthru
      _
    // Predicated region
    $region26: #{_net_forward_impl.1} parent=1 // pred_check
      _
    $region27: #{_net_forward_impl.1} parent=1 // pred_check_branch
      %47 = sbr.rel (0) target = $region29
    $region28: #{_net_forward_impl.1} parent=1 // pred_region
      _
    $region29: #{_net_forward_impl.1} parent=1 // pred_fallthru
      _
    // Predicated region
    $region30: #{_net_forward_impl.1} parent=1 // pred_check
      _
    $region31: #{_net_forward_impl.1} parent=1 // pred_check_branch
      %49 = sbr.rel (0) target = $region33
    $region32: #{_net_forward_impl.1} parent=1 // pred_region
      %50 = dma.done [#allocation3], 2048
    $region33: #{_net_forward_impl.1} parent=1 // pred_fallthru
      _
    // Predicated region
    $region34: #{_net_forward_impl.1} parent=1 // pred_check
      _
    $region35: #{_net_forward_impl.1} parent=1 // pred_check_branch
      %52 = sbr.rel (0) target = $region37
    $region36: #{_net_forward_impl.1} parent=1 // pred_region
      %53 = dma.done [#allocation5], 1024
    $region37: #{_net_forward_impl.1} parent=1 // pred_fallthru
      _
    %v55 = vld [vmem:[%s0] sm:$0xf]
    %v56 = vld [vmem:[%s0 + $0x4] sm:$0xf]
    %v57 = vld [vmem:[%s1] sm:$0xf]
    %v58 = vld [vmem:[%s1 + $0x4] sm:$0xf]
    %v59 = vld [vmem:[%s2] sm:$0x1]
    %v61 = vlaneseq
    %v62 = vshrl.u32 %v61, 7
    %v63 = vsub.s32 0, %v62
    %v64 = vrot.slane %v59, %v63
    %v68 = vunpack.c.l.b16 %v55
    %v69 = vunpack.c.l.b16 %v56
    %v70 = vpack.c.b16 %v69, %v68
    %v73 = vunpack.c.l.b16 %v57
    %v74 = vunpack.c.l.b16 %v58
    %v75 = vpack.c.b16 %v74, %v73
    %vm77 = vcmask 130048
    %v79 = vsel %vm77, %v70, 0
    %81 = vmatprep.subr.bf16.mxu0 0
    %82 = vmatpush1.bf16.msra.mxu0 0
    %83 = vmatprep.subr.bf16.mxu0 0
    %84 = vmatpush1.bf16.msra.mxu0 0
    %85 = vmatprep.subr.bf16.mxu0 0
    %86 = vmatpush1.bf16.msra.mxu0 0
    %87 = vmatprep.subr.bf16.mxu0 0
    %88 = vmatpush1.bf16.msra.mxu0 0
    %89 = vmatprep.subr.bf16.mxu0 0
    %90 = vmatpush1.bf16.msra.mxu0 0
    %91 = vmatprep.subr.bf16.mxu0 0
    %92 = vmatpush1.bf16.msra.mxu0 0
    %93 = vmatprep.subr.bf16.mxu0 0
    %94 = vmatpush1.bf16.msra.mxu0 0
    %95 = vmatprep.subr.bf16.mxu0 0
    %96 = vmatpush1.bf16.msra.mxu0 %v75
    %97 = vmatprep.subr.bf16.mxu0 0
    %98 = vmatpush2.bf16.msra.mxu0 0
    %99 = vmatprep.subr.bf16.mxu0 0
    %100 = vmatpush2.bf16.msra.mxu0 0
    %101 = vmatprep.subr.bf16.mxu0 0
    %102 = vmatpush2.bf16.msra.mxu0 0
    %103 = vmatprep.subr.bf16.mxu0 0
    %104 = vmatpush2.bf16.msra.mxu0 0
    %105 = vmatprep.subr.bf16.mxu0 0
    %106 = vmatpush2.bf16.msra.mxu0 0
    %107 = vmatprep.subr.bf16.mxu0 0
    %108 = vmatpush2.bf16.msra.mxu0 0
    %109 = vmatprep.subr.bf16.mxu0 0
    %110 = vmatpush2.bf16.msra.mxu0 0
    %111 = vmatprep.subr.bf16.mxu0 0
    %112 = vmatpush2.bf16.msra.mxu0 0
    %113 = vmatprep.mubr.bf16.mxu0 0
    %114 = vmatmul.mubr.bf16.gmra.mxu0 %v79
    %v115 = vpop.f32.mrf.mxu0
    %v116 = vadd.f32 %v64, %v115
    %v117 = vpop.f32.mrf.mxu0
    %v118 = vpop.f32.mrf.mxu0
    %v119 = vadd.f32 %v64, %v118
    %v120 = vpop.f32.mrf.mxu0
    %121 = vdwg.mxu0
    %v122 = vmax.f32 %v116, 0.0
    %v123 = vmax.f32 %v119, 0.0
    %v124 = vpack.c.bf16 %v123, %v122
    %v125 = vld [vmem:[#allocation2] sm:$0xf]
    %v126 = vld [vmem:[#allocation2 + $0x4] sm:$0xf]
    %v127 = vld [vmem:[#allocation2 + $0x8] sm:$0xf]
    %v128 = vld [vmem:[#allocation2 + $0xc] sm:$0xf]
    %v129 = vld [vmem:[#allocation2 + $0x10] sm:$0xf]
    %v130 = vld [vmem:[#allocation2 + $0x14] sm:$0xf]
    %v131 = vld [vmem:[#allocation2 + $0x18] sm:$0xf]
    %v132 = vld [vmem:[#allocation2 + $0x1c] sm:$0xf]
    %v133 = vld [vmem:[#allocation2 + $0x20] sm:$0xf]
    %v134 = vld [vmem:[#allocation2 + $0x24] sm:$0xf]
    %v135 = vld [vmem:[#allocation2 + $0x28] sm:$0xf]
    %v136 = vld [vmem:[#allocation2 + $0x2c] sm:$0xf]
    %v137 = vld [vmem:[#allocation2 + $0x30] sm:$0xf]
    %v138 = vld [vmem:[#allocation2 + $0x34] sm:$0xf]
    %v139 = vld [vmem:[#allocation2 + $0x38] sm:$0xf]
    %v140 = vld [vmem:[#allocation2 + $0x3c] sm:$0xf]
    %v141 = vld [vmem:[%s4] sm:$0x1]
    %v143 = vlaneseq
    %v144 = vshrl.u32 %v143, 7
    %v145 = vsub.s32 0, %v144
    %v146 = vrot.slane %v141, %v145
    %v164 = vunpack.c.l.b16 %v125
    %v165 = vunpack.c.l.b16 %v126
    %v166 = vunpack.c.l.b16 %v127
    %v167 = vunpack.c.l.b16 %v128
    %v168 = vunpack.c.l.b16 %v129
    %v169 = vunpack.c.l.b16 %v130
    %v170 = vunpack.c.l.b16 %v131
    %v171 = vunpack.c.l.b16 %v132
    %v172 = vunpack.c.l.b16 %v133
    %v173 = vunpack.c.l.b16 %v134
    %v174 = vunpack.c.l.b16 %v135
    %v175 = vunpack.c.l.b16 %v136
    %v176 = vunpack.c.l.b16 %v137
    %v177 = vunpack.c.l.b16 %v138
    %v178 = vunpack.c.l.b16 %v139
    %v179 = vunpack.c.l.b16 %v140
    %v180 = vpack.c.b16 %v165, %v164
    %v181 = vpack.c.b16 %v167, %v166
    %v182 = vpack.c.b16 %v169, %v168
    %v183 = vpack.c.b16 %v171, %v170
    %v184 = vpack.c.b16 %v173, %v172
    %v185 = vpack.c.b16 %v175, %v174
    %v186 = vpack.c.b16 %v177, %v176
    %v187 = vpack.c.b16 %v179, %v178
    %196 = vmatprep.subr.bf16.mxu0 0
    %197 = vmatpush1.bf16.msra.mxu0 %v187
    %198 = vmatprep.subr.bf16.mxu0 0
    %199 = vmatpush1.bf16.msra.mxu0 %v186
    %200 = vmatprep.subr.bf16.mxu0 0
    %201 = vmatpush1.bf16.msra.mxu0 %v185
    %202 = vmatprep.subr.bf16.mxu0 0
    %203 = vmatpush1.bf16.msra.mxu0 %v184
    %204 = vmatprep.subr.bf16.mxu0 0
    %205 = vmatpush1.bf16.msra.mxu0 %v183
    %206 = vmatprep.subr.bf16.mxu0 0
    %207 = vmatpush1.bf16.msra.mxu0 %v182
    %208 = vmatprep.subr.bf16.mxu0 0
    %209 = vmatpush1.bf16.msra.mxu0 %v181
    %210 = vmatprep.subr.bf16.mxu0 0
    %211 = vmatpush1.bf16.msra.mxu0 %v180
    %212 = vmatprep.subr.bf16.mxu0 0
    %213 = vmatpush2.bf16.msra.mxu0 0
    %214 = vmatprep.subr.bf16.mxu0 0
    %215 = vmatpush2.bf16.msra.mxu0 0
    %216 = vmatprep.subr.bf16.mxu0 0
    %217 = vmatpush2.bf16.msra.mxu0 0
    %218 = vmatprep.subr.bf16.mxu0 0
    %219 = vmatpush2.bf16.msra.mxu0 0
    %220 = vmatprep.subr.bf16.mxu0 0
    %221 = vmatpush2.bf16.msra.mxu0 0
    %222 = vmatprep.subr.bf16.mxu0 0
    %223 = vmatpush2.bf16.msra.mxu0 0
    %224 = vmatprep.subr.bf16.mxu0 0
    %225 = vmatpush2.bf16.msra.mxu0 0
    %226 = vmatprep.subr.bf16.mxu0 0
    %227 = vmatpush2.bf16.msra.mxu0 0
    %228 = vmatprep.mubr.bf16.mxu0 0
    %229 = vmatmul.mubr.bf16.gmra.mxu0 %v124
    %v230 = vpop.f32.mrf.mxu0
    %v231 = vadd.f32 %v146, %v230
    %v232 = vpop.f32.mrf.mxu0
    %v233 = vpop.f32.mrf.mxu0
    %v234 = vadd.f32 %v146, %v233
    %v235 = vpop.f32.mrf.mxu0
    %236 = vdwg.mxu0
    %v237 = vmax.f32 %v231, 0.0
    %v238 = vmax.f32 %v234, 0.0
    %v239 = vadd.f32 %v122, %v237
    %v240 = vadd.f32 %v123, %v238
    %v241 = vpack.c.bf16 %v240, %v239
    %s242 = scalar_lea.vmem [#allocation2], 64
    %v243 = vld [vmem:[%s242] sm:$0xf]
    %v244 = vld [vmem:[%s242 + $0x4] sm:$0xf]
    %v245 = vld [vmem:[%s242 + $0x8] sm:$0xf]
    %v246 = vld [vmem:[%s242 + $0xc] sm:$0xf]
    %v247 = vld [vmem:[%s242 + $0x10] sm:$0xf]
    %v248 = vld [vmem:[%s242 + $0x14] sm:$0xf]
    %v249 = vld [vmem:[%s242 + $0x18] sm:$0xf]
    %v250 = vld [vmem:[%s242 + $0x1c] sm:$0xf]
    %v251 = vld [vmem:[%s242 + $0x20] sm:$0xf]
    %v252 = vld [vmem:[%s242 + $0x24] sm:$0xf]
    %v253 = vld [vmem:[%s242 + $0x28] sm:$0xf]
    %v254 = vld [vmem:[%s242 + $0x2c] sm:$0xf]
    %v255 = vld [vmem:[%s242 + $0x30] sm:$0xf]
    %v256 = vld [vmem:[%s242 + $0x34] sm:$0xf]
    %v257 = vld [vmem:[%s242 + $0x38] sm:$0xf]
    %v258 = vld [vmem:[%s242 + $0x3c] sm:$0xf]
    %s259 = scalar_lea.vmem %s4, 1
    %v260 = vld [vmem:[%s259] sm:$0x1]
    %v262 = vlaneseq
    %v263 = vshrl.u32 %v262, 7
    %v264 = vsub.s32 0, %v263
    %v265 = vrot.slane %v260, %v264
    %v283 = vunpack.c.l.b16 %v243
    %v284 = vunpack.c.l.b16 %v244
    %v285 = vunpack.c.l.b16 %v245
    %v286 = vunpack.c.l.b16 %v246
    %v287 = vunpack.c.l.b16 %v247
    %v288 = vunpack.c.l.b16 %v248
    %v289 = vunpack.c.l.b16 %v249
    %v290 = vunpack.c.l.b16 %v250
    %v291 = vunpack.c.l.b16 %v251
    %v292 = vunpack.c.l.b16 %v252
    %v293 = vunpack.c.l.b16 %v253
    %v294 = vunpack.c.l.b16 %v254
    %v295 = vunpack.c.l.b16 %v255
    %v296 = vunpack.c.l.b16 %v256
    %v297 = vunpack.c.l.b16 %v257
    %v298 = vunpack.c.l.b16 %v258
    %v299 = vpack.c.b16 %v284, %v283
    %v300 = vpack.c.b16 %v286, %v285
    %v301 = vpack.c.b16 %v288, %v287
    %v302 = vpack.c.b16 %v290, %v289
    %v303 = vpack.c.b16 %v292, %v291
    %v304 = vpack.c.b16 %v294, %v293
    %v305 = vpack.c.b16 %v296, %v295
    %v306 = vpack.c.b16 %v298, %v297
    %315 = vmatprep.subr.bf16.mxu0 0
    %316 = vmatpush1.bf16.msra.mxu0 %v306
    %317 = vmatprep.subr.bf16.mxu0 0
    %318 = vmatpush1.bf16.msra.mxu0 %v305
    %319 = vmatprep.subr.bf16.mxu0 0
    %320 = vmatpush1.bf16.msra.mxu0 %v304
    %321 = vmatprep.subr.bf16.mxu0 0
    %322 = vmatpush1.bf16.msra.mxu0 %v303
    %323 = vmatprep.subr.bf16.mxu0 0
    %324 = vmatpush1.bf16.msra.mxu0 %v302
    %325 = vmatprep.subr.bf16.mxu0 0
    %326 = vmatpush1.bf16.msra.mxu0 %v301
    %327 = vmatprep.subr.bf16.mxu0 0
    %328 = vmatpush1.bf16.msra.mxu0 %v300
    %329 = vmatprep.subr.bf16.mxu0 0
    %330 = vmatpush1.bf16.msra.mxu0 %v299
    %331 = vmatprep.subr.bf16.mxu0 0
    %332 = vmatpush2.bf16.msra.mxu0 0
    %333 = vmatprep.subr.bf16.mxu0 0
    %334 = vmatpush2.bf16.msra.mxu0 0
    %335 = vmatprep.subr.bf16.mxu0 0
    %336 = vmatpush2.bf16.msra.mxu0 0
    %337 = vmatprep.subr.bf16.mxu0 0
    %338 = vmatpush2.bf16.msra.mxu0 0
    %339 = vmatprep.subr.bf16.mxu0 0
    %340 = vmatpush2.bf16.msra.mxu0 0
    %341 = vmatprep.subr.bf16.mxu0 0
    %342 = vmatpush2.bf16.msra.mxu0 0
    %343 = vmatprep.subr.bf16.mxu0 0
    %344 = vmatpush2.bf16.msra.mxu0 0
    %345 = vmatprep.subr.bf16.mxu0 0
    %346 = vmatpush2.bf16.msra.mxu0 0
    %347 = vmatprep.mubr.bf16.mxu0 0
    %348 = vmatmul.mubr.bf16.gmra.mxu0 %v241
    %v349 = vpop.f32.mrf.mxu0
    %v350 = vadd.f32 %v265, %v349
    %v351 = vpop.f32.mrf.mxu0
    %v352 = vpop.f32.mrf.mxu0
    %v353 = vadd.f32 %v265, %v352
    %v354 = vpop.f32.mrf.mxu0
    %355 = vdwg.mxu0
    %v356 = vmax.f32 %v350, 0.0
    %v357 = vmax.f32 %v353, 0.0
    %v358 = vadd.f32 %v239, %v356
    %v359 = vadd.f32 %v240, %v357
    %v360 = vpack.c.bf16 %v359, %v358
    %v361 = vld [vmem:[#allocation4] sm:$0xf]
    %v362 = vld [vmem:[#allocation4 + $0x4] sm:$0xf]
    %v363 = vld [vmem:[#allocation4 + $0x8] sm:$0xf]
    %v364 = vld [vmem:[#allocation4 + $0xc] sm:$0xf]
    %v365 = vld [vmem:[#allocation4 + $0x10] sm:$0xf]
    %v366 = vld [vmem:[#allocation4 + $0x14] sm:$0xf]
    %v367 = vld [vmem:[#allocation4 + $0x18] sm:$0xf]
    %v368 = vld [vmem:[#allocation4 + $0x1c] sm:$0xf]
    %v369 = vld [vmem:[#allocation4 + $0x20] sm:$0xf]
    %v370 = vld [vmem:[#allocation4 + $0x24] sm:$0xf]
    %v371 = vld [vmem:[#allocation4 + $0x28] sm:$0xf]
    %v372 = vld [vmem:[#allocation4 + $0x2c] sm:$0xf]
    %v373 = vld [vmem:[#allocation4 + $0x30] sm:$0xf]
    %v374 = vld [vmem:[#allocation4 + $0x34] sm:$0xf]
    %v375 = vld [vmem:[#allocation4 + $0x38] sm:$0xf]
    %v376 = vld [vmem:[#allocation4 + $0x3c] sm:$0xf]
    %v377 = vld [vmem:[%s6] sm:$0x1]
    %v379 = vlaneseq
    %v380 = vshrl.u32 %v379, 7
    %v381 = vsub.s32 0, %v380
    %v382 = vrot.slane %v377, %v381
    %v400 = vunpack.c.l.b16 %v361
    %v401 = vunpack.c.l.b16 %v362
    %v402 = vunpack.c.l.b16 %v363
    %v403 = vunpack.c.l.b16 %v364
    %v404 = vunpack.c.l.b16 %v365
    %v405 = vunpack.c.l.b16 %v366
    %v406 = vunpack.c.l.b16 %v367
    %v407 = vunpack.c.l.b16 %v368
    %v408 = vunpack.c.l.b16 %v369
    %v409 = vunpack.c.l.b16 %v370
    %v410 = vunpack.c.l.b16 %v371
    %v411 = vunpack.c.l.b16 %v372
    %v412 = vunpack.c.l.b16 %v373
    %v413 = vunpack.c.l.b16 %v374
    %v414 = vunpack.c.l.b16 %v375
    %v415 = vunpack.c.l.b16 %v376
    %v416 = vpack.c.b16 %v401, %v400
    %v417 = vpack.c.b16 %v403, %v402
    %v418 = vpack.c.b16 %v405, %v404
    %v419 = vpack.c.b16 %v407, %v406
    %v420 = vpack.c.b16 %v409, %v408
    %v421 = vpack.c.b16 %v411, %v410
    %v422 = vpack.c.b16 %v413, %v412
    %v423 = vpack.c.b16 %v415, %v414
    %432 = vmatprep.subr.bf16.mxu0 0
    %433 = vmatpush1.bf16.msra.mxu0 %v423
    %434 = vmatprep.subr.bf16.mxu0 0
    %435 = vmatpush1.bf16.msra.mxu0 %v422
    %436 = vmatprep.subr.bf16.mxu0 0
    %437 = vmatpush1.bf16.msra.mxu0 %v421
    %438 = vmatprep.subr.bf16.mxu0 0
    %439 = vmatpush1.bf16.msra.mxu0 %v420
    %440 = vmatprep.subr.bf16.mxu0 0
    %441 = vmatpush1.bf16.msra.mxu0 %v419
    %442 = vmatprep.subr.bf16.mxu0 0
    %443 = vmatpush1.bf16.msra.mxu0 %v418
    %444 = vmatprep.subr.bf16.mxu0 0
    %445 = vmatpush1.bf16.msra.mxu0 %v417
    %446 = vmatprep.subr.bf16.mxu0 0
    %447 = vmatpush1.bf16.msra.mxu0 %v416
    %448 = vmatprep.subr.bf16.mxu0 0
    %449 = vmatpush2.bf16.msra.mxu0 0
    %450 = vmatprep.subr.bf16.mxu0 0
    %451 = vmatpush2.bf16.msra.mxu0 0
    %452 = vmatprep.subr.bf16.mxu0 0
    %453 = vmatpush2.bf16.msra.mxu0 0
    %454 = vmatprep.subr.bf16.mxu0 0
    %455 = vmatpush2.bf16.msra.mxu0 0
    %456 = vmatprep.subr.bf16.mxu0 0
    %457 = vmatpush2.bf16.msra.mxu0 0
    %458 = vmatprep.subr.bf16.mxu0 0
    %459 = vmatpush2.bf16.msra.mxu0 0
    %460 = vmatprep.subr.bf16.mxu0 0
    %461 = vmatpush2.bf16.msra.mxu0 0
    %462 = vmatprep.subr.bf16.mxu0 0
    %463 = vmatpush2.bf16.msra.mxu0 0
    %464 = vmatprep.mubr.bf16.mxu0 0
    %465 = vmatmul.mubr.bf16.gmra.mxu0 %v360
    %v466 = vpop.f32.mrf.mxu0
    %v467 = vadd.f32 %v382, %v466
    %v468 = vpop.f32.mrf.mxu0
    %v469 = vpop.f32.mrf.mxu0
    %v470 = vadd.f32 %v382, %v469
    %v471 = vpop.f32.mrf.mxu0
    %472 = vdwg.mxu0
    %473 = vst [vmem:[%s7] sm:$0xff] %v467
    %474 = vst [vmem:[%s7 + $0x8] sm:$0xff] %v470
    // Predicated region
    $region38: #{_net_forward_impl.1} parent=1 // pred_check
      _
    $region39: #{_net_forward_impl.1} parent=1 // pred_check_branch
      %476 = sbr.rel (0) target = $region41
    $region40: #{_net_forward_impl.1} parent=1 // pred_region
      _
    $region41: #{_net_forward_impl.1} parent=1 // pred_fallthru
      _
    // Predicated region
    $region42: #{_net_forward_impl.1} parent=1 // pred_check
      _
    $region43: #{_net_forward_impl.1} parent=1 // pred_check_branch
      %478 = sbr.rel (0) target = $region45
    $region44: #{_net_forward_impl.1} parent=1 // pred_region
      _
    $region45: #{_net_forward_impl.1} parent=1 // pred_fallthru
      _
    %479 = vsyncpa [#allocation3], 1
    %480 = vsyncpa [#allocation5], 1

</llo_original>
